<compile_context>
chip_gen: v5e
topology: v5e:2x2
jax: 0.10.0
libtpu: 0.0.40
codegen_flags: <defaults>
</compile_context>

<pallas_src>
import jax
import jax.numpy as jnp
from jax.experimental import pallas as pl
from jax.experimental.pallas import tpu as pltpu

FEAT = 504                 # classifier input dim (nn.Linear(504, 2))
NCLS = 2                   # classifier output dim
ROW_GRANULE = 16           # bf16 sublane granule (covers f32's 8 as well)
X_TILE_BYTES = 4 << 20     # ~4 MiB of features per pipeline buffer
VMEM_LIMIT_MIN = 16 << 20
VMEM_LIMIT_MAX = 32 << 20  # <= v7x default scope, well under its 64 MiB physical


def _round_up(n, g):
    return ((n + g - 1) // g) * g


def _is_two_core_chip():
    """v7x has 2 TensorCores and 64 MiB VMEM per core; v5e/v6e have 1 TC / 128 MiB."""
    try:
        info = pltpu.get_tpu_info()
        return getattr(info, "vmem_capacity_bytes", 128 << 20) < (100 << 20)
    except Exception:  # unknown / query unavailable -> assume single core (safe default)
        return False


def _pick_tile_b(batch, itemsize, two_cores):
    """Byte-budgeted, dtype-aware batch tile; optionally balanced across 2 TensorCores."""
    cap = max(ROW_GRANULE,
              (X_TILE_BYTES // (FEAT * itemsize)) // ROW_GRANULE * ROW_GRANULE)
    if batch <= cap:
        if two_cores and batch > ROW_GRANULE:
            # v7x: >= 2 balanced grid steps so the 'parallel' batch axis can shard
            # across both TensorCores.
            return _round_up(-(-batch // 2), ROW_GRANULE)
        return _round_up(batch, ROW_GRANULE)
    nsteps = -(-batch // cap)
    if two_cores and nsteps % 2:
        nsteps += 1            # even step count -> balanced split across the 2 TCs
    return _round_up(-(-batch // nsteps), ROW_GRANULE)


def classifier_kernel(x_ref, wt_ref, b_ref, o_ref):
    # x_ref : [tile_b, FEAT]  feature tile (bf16 or f32)
    # wt_ref: [FEAT, NCLS]    W^T in the feature dtype (resident across grid steps)
    # b_ref : [1, NCLS]       f32 bias
    # o_ref : [tile_b, NCLS]  f32 probabilities
    logits = jnp.dot(x_ref[...], wt_ref[...], preferred_element_type=jnp.float32)
    logits = logits + b_ref[...]                    # f32 epilogue, broadcast over rows
    # Exact sigmoid with a single EUP op: sigmoid(z) = 0.5 * tanh(0.5 * z) + 0.5.
    # tanh also keeps padded rows of a partial last block bounded (no inf from exp).
    o_ref[...] = (0.5 * jnp.tanh(0.5 * logits) + 0.5).astype(o_ref.dtype)


def contrasnet_classify(x, w, b):
    """x: [B, FEAT] features (bf16 or f32), w: [NCLS, FEAT], b: [NCLS].
    Returns sigmoid(x @ w.T + b) as f32 [B, NCLS]."""
    B, F = x.shape
    assert F == FEAT and w.shape == (NCLS, FEAT) and b.shape == (NCLS,)

    # Tiny parameter tensors: transpose/cast in glue. Weights match x's dtype so the MXU
    # sees a homogeneous matmul; accumulation is f32 via preferred_element_type.
    wt = w.T.astype(x.dtype)                        # [FEAT, NCLS]
    b2 = b.reshape(1, NCLS).astype(jnp.float32)     # [1, NCLS]

    itemsize = x.dtype.itemsize
    two_cores = _is_two_core_chip()
    tile_b = _pick_tile_b(B, itemsize, two_cores)
    grid = (pl.cdiv(B, tile_b),)                    # partial last tile masked by Pallas

    # Explicit VMEM budget (lane-padded footprint of the double-buffered tiles + params),
    # clamped to a range that is safe on every generation.
    x_vmem = 2 * tile_b * _round_up(FEAT, 128) * itemsize
    o_vmem = 2 * tile_b * _round_up(NCLS, 128) * 4
    w_vmem = 2 * _round_up(FEAT, 16) * _round_up(NCLS, 128) * itemsize
    vmem_limit = int(min(VMEM_LIMIT_MAX,
                         max(VMEM_LIMIT_MIN,
                             _round_up(int((x_vmem + o_vmem + w_vmem) * 1.25) + (2 << 20),
                                       1 << 20))))

    return pl.pallas_call(
        classifier_kernel,
        out_shape=jax.ShapeDtypeStruct((B, NCLS), jnp.float32),
        grid_spec=pltpu.PrefetchScalarGridSpec(
            num_scalar_prefetch=0,
            grid=grid,
            in_specs=[
                pl.BlockSpec((tile_b, FEAT), lambda i: (i, 0)),   # batch-tiled features
                pl.BlockSpec((FEAT, NCLS), lambda i: (0, 0)),     # full weight, resident
                pl.BlockSpec((1, NCLS), lambda i: (0, 0)),        # bias, resident
            ],
            out_specs=pl.BlockSpec((tile_b, NCLS), lambda i: (i, 0)),
        ),
        compiler_params=pltpu.CompilerParams(
            dimension_semantics=("parallel",),      # batch axis shards across v7x's 2 TCs
            vmem_limit_bytes=vmem_limit,
        ),
    )(x, wt, b2)


def reference(x, w, b):
    xf = x.astype(jnp.float32)
    wf = w.T.astype(x.dtype).astype(jnp.float32)    # same rounding as the kernel operand
    logits = jnp.dot(xf, wf, precision=jax.lax.Precision.HIGHEST) + b.astype(jnp.float32)
    return jax.nn.sigmoid(logits)


if __name__ == "__main__":
    key = jax.random.PRNGKey(0)
    kx, kw, kb = jax.random.split(key, 3)

    # Small, non-multiple-of-granule batch to exercise the cdiv grid + masked last tile.
    B = 20
    x = jax.random.normal(kx, (B, FEAT), dtype=jnp.float32).astype(jnp.bfloat16)

    # Deterministic "nn.Linear(504, 2)" parameters (uniform[-1/sqrt(504), 1/sqrt(504)]).
    bound = 1.0 / (FEAT ** 0.5)
    w = jax.random.uniform(kw, (NCLS, FEAT), minval=-bound, maxval=bound, dtype=jnp.float32)
    b = jax.random.uniform(kb, (NCLS,), minval=-bound, maxval=bound, dtype=jnp.float32)

    out = jax.block_until_ready(contrasnet_classify(x, w, b))
    ref = reference(x, w, b)

    assert out.shape == (B, NCLS)
    # bf16 MXU operands vs f32 reference of the bf16-rounded operands: ~1e-4 on [0, 1].
    assert jnp.allclose(out, ref, atol=2e-3, rtol=2e-3), "mismatch vs reference"

    print("KERNEL_OK")
</pallas_src>

<mosaic_0001>
module attributes {stable_mosaic.version = 11 : i64} {
  func.func @classifier_kernel(%arg0: i32, %arg1: memref<32x504xbf16, #tpu.memory_space<vmem>>, %arg2: memref<504x2xbf16, #tpu.memory_space<vmem>>, %arg3: memref<1x2xf32, #tpu.memory_space<vmem>>, %arg4: memref<32x2xf32, #tpu.memory_space<vmem>>) attributes {dimension_semantics = [#tpu.dimension_semantics<parallel>], iteration_bounds = array<i64: 1>, scalar_prefetch = 0 : i64, scratch_operands = 0 : i64, tpu.core_type = #tpu.core_type<tc>, window_params = [{transform_indices = @transform_0, window_bounds = array<i64: 32, 504>}, {pipeline_mode = #tpu.pipeline_mode<synchronous>, transform_indices = @transform_1, window_bounds = array<i64: 504, 2>}, {pipeline_mode = #tpu.pipeline_mode<synchronous>, transform_indices = @transform_2, window_bounds = array<i64: 1, 2>}, {transform_indices = @transform_3, window_bounds = array<i64: 32, 2>}]} {
    %c0 = arith.constant 0 : index
    %c0_0 = arith.constant 0 : index
    %0 = vector.load %arg1[%c0, %c0_0] : memref<32x504xbf16, #tpu.memory_space<vmem>>, vector<32x504xbf16>
    %c0_1 = arith.constant 0 : index
    %c0_2 = arith.constant 0 : index
    %1 = vector.load %arg2[%c0_1, %c0_2] : memref<504x2xbf16, #tpu.memory_space<vmem>>, vector<504x2xbf16>
    %cst = arith.constant dense<0.000000e+00> : vector<32x2xf32>
    %2 = tpu.matmul %0, %1, %cst {dimension_numbers = #tpu.dot_dimension_numbers<[1], [0], [0], [1], [0, 0, 1, 1], [], []>} : vector<32x504xbf16>, vector<504x2xbf16>, vector<32x2xf32> -> vector<32x2xf32>
    %c0_3 = arith.constant 0 : index
    %c0_4 = arith.constant 0 : index
    %3 = vector.load %arg3[%c0_3, %c0_4] : memref<1x2xf32, #tpu.memory_space<vmem>>, vector<1x2xf32>
    %4 = vector.broadcast %3 : vector<1x2xf32> to vector<32x2xf32>
    %5 = arith.addf %2, %4 : vector<32x2xf32>
    %cst_5 = arith.constant 5.000000e-01 : f32
    %6 = vector.broadcast %cst_5 : f32 to vector<32x2xf32>
    %7 = arith.mulf %6, %5 : vector<32x2xf32>
    %8 = math.tanh %7 : vector<32x2xf32>
    %cst_6 = arith.constant 5.000000e-01 : f32
    %9 = vector.broadcast %cst_6 : f32 to vector<32x2xf32>
    %10 = arith.mulf %9, %8 : vector<32x2xf32>
    %cst_7 = arith.constant 5.000000e-01 : f32
    %11 = vector.broadcast %cst_7 : f32 to vector<32x2xf32>
    %12 = arith.addf %10, %11 : vector<32x2xf32>
    %c0_8 = arith.constant 0 : index
    %c0_9 = arith.constant 0 : index
    %13 = vector.load %arg4[%c0_8, %c0_9] : memref<32x2xf32, #tpu.memory_space<vmem>>, vector<32x2xf32>
    tpu.vector_store %arg4[%c0_8, %c0_9], %12 {strides = array<i32>} : memref<32x2xf32, #tpu.memory_space<vmem>>, vector<32x2xf32>,
    return
  }
  func.func @transform_0(%arg0: i32) -> (i32, i32) {
    %c0_i32 = arith.constant 0 : i32
    %c0_i32_0 = arith.constant 0 : i32
    return %arg0, %c0_i32 : i32, i32
  }
  func.func @transform_1(%arg0: i32) -> (i32, i32) {
    %c0_i32 = arith.constant 0 : i32
    %c0_i32_0 = arith.constant 0 : i32
    %c0_i32_1 = arith.constant 0 : i32
    return %c0_i32, %c0_i32_0 : i32, i32
  }
  func.func @transform_2(%arg0: i32) -> (i32, i32) {
    %c0_i32 = arith.constant 0 : i32
    %c0_i32_0 = arith.constant 0 : i32
    %c0_i32_1 = arith.constant 0 : i32
    return %c0_i32, %c0_i32_0 : i32, i32
  }
  func.func @transform_3(%arg0: i32) -> (i32, i32) {
    %c0_i32 = arith.constant 0 : i32
    %c0_i32_0 = arith.constant 0 : i32
    return %arg0, %c0_i32 : i32, i32
  }
}

</mosaic_0001>

<llo_original>
// kernel: tpu_custom_call.1
$region0: #{tpu_custom_call.1}
  #allocation0 [shape = 'u32[]', space=smem, size = 0x4, offset = 0x4, fixed_abs, tag = 'smem constant byte address 0x4 - core index']
  #allocation1 [shape = 'u32[72,128]{1,0:T(1,128)}', space=vmem, size = 0x9000, scoped, tag = 'internal scratch']
  %s0 = inlined_call_operand.vmem [shape: bf16[20,504], index: 0, kind: input, shape index: {}]
  %s1 = inlined_call_operand.vmem [shape: bf16[504,2], index: 1, kind: input, shape index: {}]
  %s2 = inlined_call_operand.vmem [shape: f32[1,2], index: 2, kind: input, shape index: {}]
  %s3 = inlined_call_operand.vmem [shape: f32[20,2], index: 3, kind: output, shape index: {}]
  %s4 = sld [smem:[#allocation0]]
  $region56: #{tpu_custom_call.1} parent=0
    _
  %s6 = ssub.s32 1, %s4
  %s7 = scalar_select 0, %s6, %s4
  $region1: #{tpu_custom_call.1} parent=0
    #allocation2 [shape = 'u8[16384]{0}', space=vmem, size = 0x4000, scoped, tag = 'output window, operand 0, single buffered']
    // Predicated region
    $region2: #{tpu_custom_call.1} parent=1 // pred_check
      _
    $region3: #{tpu_custom_call.1} parent=1 // pred_check_branch
      %9 = sbr.rel (0) target = $region5
    $region4: #{tpu_custom_call.1} parent=1 // pred_region
      _
    $region5: #{tpu_custom_call.1} parent=1 // pred_fallthru
      _
    // Predicated region
    $region6: #{tpu_custom_call.1} parent=1 // pred_check
      _
    $region7: #{tpu_custom_call.1} parent=1 // pred_check_branch
      %11 = sbr.rel (0) target = $region9
    $region8: #{tpu_custom_call.1} parent=1 // pred_region
      _
    $region9: #{tpu_custom_call.1} parent=1 // pred_fallthru
      _
    // Predicated region
    $region10: #{tpu_custom_call.1} parent=1 // pred_check
      _
    $region11: #{tpu_custom_call.1} parent=1 // pred_check_branch
      %13 = sbr.rel (0) target = $region13
    $region12: #{tpu_custom_call.1} parent=1 // pred_region
      _
    $region13: #{tpu_custom_call.1} parent=1 // pred_fallthru
      _
    %v14 = vld [vmem:[%s0] sm:$0xff]
    %v15 = vld [vmem:[%s0 + $0x8] sm:$0xff]
    %v16 = vld [vmem:[%s0 + $0x10] sm:$0xff]
    %v17 = vld [vmem:[%s0 + $0x18] sm:$0xff]
    %v18 = vld [vmem:[%s0 + $0x20] sm:$0xff]
    %v19 = vld [vmem:[%s0 + $0x28] sm:$0xff]
    %v20 = vld [vmem:[%s0 + $0x30] sm:$0xff]
    %v21 = vld [vmem:[%s0 + $0x38] sm:$0xff]
    %v22 = vld [vmem:[%s1] sm:$0xf]
    %v23 = vld [vmem:[%s1 + $0x4] sm:$0xf]
    %v24 = vld [vmem:[%s1 + $0x8] sm:$0xf]
    %v25 = vld [vmem:[%s1 + $0xc] sm:$0xf]
    %v26 = vld [vmem:[%s1 + $0x10] sm:$0xf]
    %v27 = vld [vmem:[%s1 + $0x14] sm:$0xf]
    %v28 = vld [vmem:[%s1 + $0x18] sm:$0xf]
    %v29 = vld [vmem:[%s1 + $0x1c] sm:$0xf]
    %v30 = vld [vmem:[%s1 + $0x20] sm:$0xf]
    %v31 = vld [vmem:[%s1 + $0x24] sm:$0xf]
    %v32 = vld [vmem:[%s1 + $0x28] sm:$0xf]
    %v33 = vld [vmem:[%s1 + $0x2c] sm:$0xf]
    %v34 = vld [vmem:[%s1 + $0x30] sm:$0xf]
    %v35 = vld [vmem:[%s1 + $0x34] sm:$0xf]
    %v36 = vld [vmem:[%s1 + $0x38] sm:$0xf]
    %v37 = vld [vmem:[%s1 + $0x3c] sm:$0xf]
    %v38 = vld [vmem:[%s1 + $0x40] sm:$0xf]
    %v39 = vld [vmem:[%s1 + $0x44] sm:$0xf]
    %v40 = vld [vmem:[%s1 + $0x48] sm:$0xf]
    %v41 = vld [vmem:[%s1 + $0x4c] sm:$0xf]
    %v42 = vld [vmem:[%s1 + $0x50] sm:$0xf]
    %v43 = vld [vmem:[%s1 + $0x54] sm:$0xf]
    %v44 = vld [vmem:[%s1 + $0x58] sm:$0xf]
    %v45 = vld [vmem:[%s1 + $0x5c] sm:$0xf]
    %v46 = vld [vmem:[%s1 + $0x60] sm:$0xf]
    %v47 = vld [vmem:[%s1 + $0x64] sm:$0xf]
    %v48 = vld [vmem:[%s1 + $0x68] sm:$0xf]
    %v49 = vld [vmem:[%s1 + $0x6c] sm:$0xf]
    %v50 = vld [vmem:[%s1 + $0x70] sm:$0xf]
    %v51 = vld [vmem:[%s1 + $0x74] sm:$0xf]
    %v52 = vld [vmem:[%s1 + $0x78] sm:$0xf]
    %v53 = vld [vmem:[%s1 + $0x7c] sm:$0xf]
    %v54 = vld [vmem:[%s1 + $0x80] sm:$0xf]
    %v55 = vld [vmem:[%s1 + $0x84] sm:$0xf]
    %v56 = vld [vmem:[%s1 + $0x88] sm:$0xf]
    %v57 = vld [vmem:[%s1 + $0x8c] sm:$0xf]
    %v58 = vld [vmem:[%s1 + $0x90] sm:$0xf]
    %v59 = vld [vmem:[%s1 + $0x94] sm:$0xf]
    %v60 = vld [vmem:[%s1 + $0x98] sm:$0xf]
    %v61 = vld [vmem:[%s1 + $0x9c] sm:$0xf]
    %v62 = vld [vmem:[%s1 + $0xa0] sm:$0xf]
    %v63 = vld [vmem:[%s1 + $0xa4] sm:$0xf]
    %v64 = vld [vmem:[%s1 + $0xa8] sm:$0xf]
    %v65 = vld [vmem:[%s1 + $0xac] sm:$0xf]
    %v66 = vld [vmem:[%s1 + $0xb0] sm:$0xf]
    %v67 = vld [vmem:[%s1 + $0xb4] sm:$0xf]
    %v68 = vld [vmem:[%s1 + $0xb8] sm:$0xf]
    %v69 = vld [vmem:[%s1 + $0xbc] sm:$0xf]
    %v70 = vld [vmem:[%s1 + $0xc0] sm:$0xf]
    %v71 = vld [vmem:[%s1 + $0xc4] sm:$0xf]
    %v72 = vld [vmem:[%s1 + $0xc8] sm:$0xf]
    %v73 = vld [vmem:[%s1 + $0xcc] sm:$0xf]
    %v74 = vld [vmem:[%s1 + $0xd0] sm:$0xf]
    %v75 = vld [vmem:[%s1 + $0xd4] sm:$0xf]
    %v76 = vld [vmem:[%s1 + $0xd8] sm:$0xf]
    %v77 = vld [vmem:[%s1 + $0xdc] sm:$0xf]
    %v78 = vld [vmem:[%s1 + $0xe0] sm:$0xf]
    %v79 = vld [vmem:[%s1 + $0xe4] sm:$0xf]
    %v80 = vld [vmem:[%s1 + $0xe8] sm:$0xf]
    %v81 = vld [vmem:[%s1 + $0xec] sm:$0xf]
    %v82 = vld [vmem:[%s1 + $0xf0] sm:$0xf]
    %v83 = vld [vmem:[%s1 + $0xf4] sm:$0xf]
    %v84 = vld [vmem:[%s1 + $0xf8] sm:$0xf]
    %v85 = vld [vmem:[%s2] sm:$0x1]
    %v87 = vperm.slane %v85, 0
    %v97 = vunpack.c.l.b16 %v14
    %v98 = vunpack.c.h.b16 %v14
    %v99 = vunpack.c.l.b16 %v15
    %v100 = vunpack.c.h.b16 %v15
    %v101 = vunpack.c.l.b16 %v16
    %v102 = vunpack.c.h.b16 %v16
    %v103 = vunpack.c.l.b16 %v17
    %v104 = vunpack.c.h.b16 %v17
    %v105 = vunpack.c.l.b16 %v18
    %v106 = vunpack.c.h.b16 %v18
    %v107 = vunpack.c.l.b16 %v19
    %v108 = vunpack.c.h.b16 %v19
    %v109 = vunpack.c.l.b16 %v20
    %v110 = vunpack.c.h.b16 %v20
    %v111 = vunpack.c.l.b16 %v21
    %v112 = vunpack.c.h.b16 %v21
    %v113 = vpack.c.b16 %v101, %v97
    %v114 = vpack.c.b16 %v102, %v98
    %v115 = vpack.c.b16 %v103, %v99
    %v116 = vpack.c.b16 %v104, %v100
    %v117 = vpack.c.b16 %v109, %v105
    %v118 = vpack.c.b16 %v110, %v106
    %v119 = vpack.c.b16 %v111, %v107
    %v120 = vpack.c.b16 %v112, %v108
    %v190 = vunpack.c.l.b16 %v22
    %v191 = vunpack.c.l.b16 %v23
    %v192 = vunpack.c.l.b16 %v24
    %v193 = vunpack.c.l.b16 %v25
    %v194 = vunpack.c.l.b16 %v26
    %v195 = vunpack.c.l.b16 %v27
    %v196 = vunpack.c.l.b16 %v28
    %v197 = vunpack.c.l.b16 %v29
    %v198 = vunpack.c.l.b16 %v30
    %v199 = vunpack.c.l.b16 %v31
    %v200 = vunpack.c.l.b16 %v32
    %v201 = vunpack.c.l.b16 %v33
    %v202 = vunpack.c.l.b16 %v34
    %v203 = vunpack.c.l.b16 %v35
    %v204 = vunpack.c.l.b16 %v36
    %v205 = vunpack.c.l.b16 %v37
    %v206 = vunpack.c.l.b16 %v38
    %v207 = vunpack.c.l.b16 %v39
    %v208 = vunpack.c.l.b16 %v40
    %v209 = vunpack.c.l.b16 %v41
    %v210 = vunpack.c.l.b16 %v42
    %v211 = vunpack.c.l.b16 %v43
    %v212 = vunpack.c.l.b16 %v44
    %v213 = vunpack.c.l.b16 %v45
    %v214 = vunpack.c.l.b16 %v46
    %v215 = vunpack.c.l.b16 %v47
    %v216 = vunpack.c.l.b16 %v48
    %v217 = vunpack.c.l.b16 %v49
    %v218 = vunpack.c.l.b16 %v50
    %v219 = vunpack.c.l.b16 %v51
    %v220 = vunpack.c.l.b16 %v52
    %v221 = vunpack.c.l.b16 %v53
    %v222 = vunpack.c.l.b16 %v54
    %v223 = vunpack.c.l.b16 %v55
    %v224 = vunpack.c.l.b16 %v56
    %v225 = vunpack.c.l.b16 %v57
    %v226 = vunpack.c.l.b16 %v58
    %v227 = vunpack.c.l.b16 %v59
    %v228 = vunpack.c.l.b16 %v60
    %v229 = vunpack.c.l.b16 %v61
    %v230 = vunpack.c.l.b16 %v62
    %v231 = vunpack.c.l.b16 %v63
    %v232 = vunpack.c.l.b16 %v64
    %v233 = vunpack.c.l.b16 %v65
    %v234 = vunpack.c.l.b16 %v66
    %v235 = vunpack.c.l.b16 %v67
    %v236 = vunpack.c.l.b16 %v68
    %v237 = vunpack.c.l.b16 %v69
    %v238 = vunpack.c.l.b16 %v70
    %v239 = vunpack.c.l.b16 %v71
    %v240 = vunpack.c.l.b16 %v72
    %v241 = vunpack.c.l.b16 %v73
    %v242 = vunpack.c.l.b16 %v74
    %v243 = vunpack.c.l.b16 %v75
    %v244 = vunpack.c.l.b16 %v76
    %v245 = vunpack.c.l.b16 %v77
    %v246 = vunpack.c.l.b16 %v78
    %v247 = vunpack.c.l.b16 %v79
    %v248 = vunpack.c.l.b16 %v80
    %v249 = vunpack.c.l.b16 %v81
    %v250 = vunpack.c.l.b16 %v82
    %v251 = vunpack.c.l.b16 %v83
    %v252 = vunpack.c.l.b16 %v84
    %v253 = vpack.c.b16 %v191, %v190
    %v254 = vpack.c.b16 %v193, %v192
    %v255 = vpack.c.b16 %v195, %v194
    %v256 = vpack.c.b16 %v197, %v196
    %v257 = vpack.c.b16 %v199, %v198
    %v258 = vpack.c.b16 %v201, %v200
    %v259 = vpack.c.b16 %v203, %v202
    %v260 = vpack.c.b16 %v205, %v204
    %v261 = vpack.c.b16 %v207, %v206
    %v262 = vpack.c.b16 %v209, %v208
    %v263 = vpack.c.b16 %v211, %v210
    %v264 = vpack.c.b16 %v213, %v212
    %v265 = vpack.c.b16 %v215, %v214
    %v266 = vpack.c.b16 %v217, %v216
    %v267 = vpack.c.b16 %v219, %v218
    %v268 = vpack.c.b16 %v221, %v220
    %v269 = vpack.c.b16 %v223, %v222
    %v270 = vpack.c.b16 %v225, %v224
    %v271 = vpack.c.b16 %v227, %v226
    %v272 = vpack.c.b16 %v229, %v228
    %v273 = vpack.c.b16 %v231, %v230
    %v274 = vpack.c.b16 %v233, %v232
    %v275 = vpack.c.b16 %v235, %v234
    %v276 = vpack.c.b16 %v237, %v236
    %v277 = vpack.c.b16 %v239, %v238
    %v278 = vpack.c.b16 %v241, %v240
    %v279 = vpack.c.b16 %v243, %v242
    %v280 = vpack.c.b16 %v245, %v244
    %v281 = vpack.c.b16 %v247, %v246
    %v282 = vpack.c.b16 %v249, %v248
    %v283 = vpack.c.b16 %v251, %v250
    %v284 = vpack.c.b16 %v252, %v252
    %vm316 = vcmask 982016
    %v318 = vsel %vm316, %v116, 0
    %v321 = vsel %vm316, %v120, 0
    %vm323 = vcmask 1043456
    %v325 = vsel %vm323, %v284, 0
    %327 = vmatpush.bf16.msra.mxu0 %v260
    %328 = vmatpush.bf16.msra.mxu0 %v259
    %329 = vmatpush.bf16.msra.mxu0 %v258
    %330 = vmatpush.bf16.msra.mxu0 %v257
    %331 = vmatpush.bf16.msra.mxu0 %v256
    %332 = vmatpush.bf16.msra.mxu0 %v255
    %333 = vmatpush.bf16.msra.mxu0 %v254
    %334 = vmatpush.bf16.msra.mxu0 %v253
    %335 = vmatmul.bf16.gmra.mxu0 %v113
    %v336 = vpop.f32.mrf.mxu0
    %v337 = vadd.f32 %v87, %v336
    %v338 = vpop.f32.mrf.mxu0
    %v339 = vadd.f32 %v87, %v338
    %340 = vmatmul.bf16.gmra.mxu0 %v117
    %v341 = vpop.f32.mrf.mxu0
    %v342 = vadd.f32 %v87, %v341
    %v343 = vpop.f32.mrf.mxu0
    %v344 = vadd.f32 %v87, %v343
    %345 = vdwg.mxu0
    %346 = vmatpush.bf16.msra.mxu0 %v268
    %347 = vmatpush.bf16.msra.mxu0 %v267
    %348 = vmatpush.bf16.msra.mxu0 %v266
    %349 = vmatpush.bf16.msra.mxu0 %v265
    %350 = vmatpush.bf16.msra.mxu0 %v264
    %351 = vmatpush.bf16.msra.mxu0 %v263
    %352 = vmatpush.bf16.msra.mxu0 %v262
    %353 = vmatpush.bf16.msra.mxu0 %v261
    %354 = vmatmul.bf16.gmra.mxu0 %v114
    %v355 = vpop.f32.mrf.mxu0
    %v356 = vadd.f32 %v337, %v355
    %v357 = vpop.f32.mrf.mxu0
    %v358 = vadd.f32 %v339, %v357
    %359 = vmatmul.bf16.gmra.mxu0 %v118
    %v360 = vpop.f32.mrf.mxu0
    %v361 = vadd.f32 %v342, %v360
    %v362 = vpop.f32.mrf.mxu0
    %v363 = vadd.f32 %v344, %v362
    %364 = vdwg.mxu0
    %365 = vmatpush.bf16.msra.mxu0 %v276
    %366 = vmatpush.bf16.msra.mxu0 %v275
    %367 = vmatpush.bf16.msra.mxu0 %v274
    %368 = vmatpush.bf16.msra.mxu0 %v273
    %369 = vmatpush.bf16.msra.mxu0 %v272
    %370 = vmatpush.bf16.msra.mxu0 %v271
    %371 = vmatpush.bf16.msra.mxu0 %v270
    %372 = vmatpush.bf16.msra.mxu0 %v269
    %373 = vmatmul.bf16.gmra.mxu0 %v115
    %v374 = vpop.f32.mrf.mxu0
    %v375 = vadd.f32 %v356, %v374
    %v376 = vpop.f32.mrf.mxu0
    %v377 = vadd.f32 %v358, %v376
    %378 = vmatmul.bf16.gmra.mxu0 %v119
    %v379 = vpop.f32.mrf.mxu0
    %v380 = vadd.f32 %v361, %v379
    %v381 = vpop.f32.mrf.mxu0
    %v382 = vadd.f32 %v363, %v381
    %383 = vdwg.mxu0
    %384 = vmatpush.bf16.msra.mxu0 %v325
    %385 = vmatpush.bf16.msra.mxu0 %v283
    %386 = vmatpush.bf16.msra.mxu0 %v282
    %387 = vmatpush.bf16.msra.mxu0 %v281
    %388 = vmatpush.bf16.msra.mxu0 %v280
    %389 = vmatpush.bf16.msra.mxu0 %v279
    %390 = vmatpush.bf16.msra.mxu0 %v278
    %391 = vmatpush.bf16.msra.mxu0 %v277
    %392 = vmatmul.bf16.gmra.mxu0 %v318
    %v393 = vpop.f32.mrf.mxu0
    %v394 = vadd.f32 %v375, %v393
    %v395 = vpop.f32.mrf.mxu0
    %v396 = vadd.f32 %v377, %v395
    %397 = vmatmul.bf16.gmra.mxu0 %v321
    %v398 = vpop.f32.mrf.mxu0
    %v399 = vadd.f32 %v380, %v398
    %v400 = vpop.f32.mrf.mxu0
    %v401 = vadd.f32 %v382, %v400
    %402 = vdwg.mxu0
    %v403 = vmul.f32 %v394, 0.5
    %v404 = vmul.f32 %v396, 0.5
    %v405 = vmul.f32 %v399, 0.5
    %v406 = vmul.f32 %v401, 0.5
    %v407 = vtanh.pop %v403
    %v408 = vtanh.pop %v404
    %v409 = vtanh.pop %v405
    %v410 = vtanh.pop %v406
    %v411 = vmul.f32 %v407, 0.5
    %v412 = vmul.f32 %v408, 0.5
    %v413 = vmul.f32 %v409, 0.5
    %v414 = vmul.f32 %v410, 0.5
    %v415 = vadd.f32 %v411, 0.5
    %v416 = vadd.f32 %v412, 0.5
    %v417 = vadd.f32 %v413, 0.5
    %v418 = vadd.f32 %v414, 0.5
    %vm419 = vcmask 15360
    %420 = vst.msk [vmem:[#allocation2] sm:$0xff] %vm419, %v415
    %421 = vst.msk [vmem:[#allocation2 + $0x8] sm:$0xff] %vm419, %v416
    %422 = vst.msk [vmem:[#allocation2 + $0x10] sm:$0xff] %vm419, %v417
    %423 = vst.msk [vmem:[#allocation2 + $0x18] sm:$0xff] %vm419, %v418
    // Predicated region
    $region14: #{tpu_custom_call.1} parent=1 // pred_check
      _
    $region15: #{tpu_custom_call.1} parent=1 // pred_check_branch
      %425 = sbr.rel (0) target = $region17
    $region16: #{tpu_custom_call.1} parent=1 // pred_region
      // Predicated region
      $region18: #{tpu_custom_call.1} parent=16 // pred_check
        _
      $region19: #{tpu_custom_call.1} parent=16 // pred_check_branch
        %427 = sbr.rel (0) target = $region21
      $region20: #{tpu_custom_call.1} parent=16 // pred_region
        // Predicated region
        $region22: #{tpu_custom_call.1} parent=20 // pred_check
          _
        $region23: #{tpu_custom_call.1} parent=20 // pred_check_branch
          %429 = sbr.rel (0) target = $region25
        $region24: #{tpu_custom_call.1} parent=20 // pred_region
          // Predicated region
          $region37: #{tpu_custom_call.1} parent=24 // pred_check
            _
          $region38: #{tpu_custom_call.1} parent=24 // pred_check_branch
            %449 = sbr.rel (0) target = $region40
          $region39: #{tpu_custom_call.1} parent=24 // pred_region
            loop: start=0, step=1, limit=1
            $region41: #{tpu_custom_call.1} parent=39 // loop_pre_header
              _
            $region42: #{tpu_custom_call.1} parent=39 // loop_header
              %s451 = sphi 0, %s455
              %p452 = scmp.ge.s32.totalorder %s451, 1
              %s456 = sphi [#allocation2], [#allocation2]
              %s457 = sphi %s3, %s3
            $region43: #{tpu_custom_call.1} parent=39 // loop_header_branch
              %454 = sbr.rel (%p452) target = $region47
            $region44: #{tpu_custom_call.1} parent=39 // loop_body
              %v458 = vld [vmem:[%s456] sm:$0xff]
              %459 = vst [vmem:[%s457] sm:$0xff] %v458
              %v460 = vld [vmem:[%s456 + $0x8] sm:$0xff]
              %461 = vst [vmem:[%s457 + $0x8] sm:$0xff] %v460
              %v462 = vld [vmem:[%s456 + $0x10] sm:$0xff]
              %463 = vst [vmem:[%s457 + $0x10] sm:$0xff] %v462
            $region45: #{tpu_custom_call.1} parent=39 // loop_footer
              %s455 = sadd.s32 1, %s451
            $region46: #{tpu_custom_call.1} parent=39 // loop_footer_branch
              %450 = sbr.rel target = $region42
            $region47: #{tpu_custom_call.1} parent=39 // loop_exit
              _
          $region40: #{tpu_custom_call.1} parent=24 // pred_fallthru
            _
          // Predicated region
          $region48: #{tpu_custom_call.1} parent=24 // pred_check
            _
          $region49: #{tpu_custom_call.1} parent=24 // pred_check_branch
            %465 = sbr.rel target = $region51
          $region50: #{tpu_custom_call.1} parent=24 // pred_region
            _
          $region51: #{tpu_custom_call.1} parent=24 // pred_fallthru
            _
        $region25: #{tpu_custom_call.1} parent=20 // pred_fallthru
          _
        // Predicated region
        $region26: #{tpu_custom_call.1} parent=20 // pred_check
          _
        $region27: #{tpu_custom_call.1} parent=20 // pred_check_branch
          %431 = sbr.rel target = $region29
        $region28: #{tpu_custom_call.1} parent=20 // pred_region
          %s433 = ssub.s32 256, 1
          loop: start=0, step=1, limit=1
          $region30: #{tpu_custom_call.1} parent=28 // loop_pre_header
            _
          $region31: #{tpu_custom_call.1} parent=28 // loop_header
            %s435 = sphi 0, %s439
            %p436 = scmp.ge.s32.totalorder %s435, 1
            %s440 = sphi [#allocation2], [#allocation2]
            %s441 = sphi %s3, %s3
          $region32: #{tpu_custom_call.1} parent=28 // loop_header_branch
            %438 = sbr.rel (%p436) target = $region36
          $region33: #{tpu_custom_call.1} parent=28 // loop_body
            %v442 = vld [vmem:[%s440] sm:%s433]
            %443 = vst [vmem:[%s441] sm:%s433] %v442
            %v444 = vld [vmem:[%s440 + $0x8] sm:%s433]
            %445 = vst [vmem:[%s441 + $0x8] sm:%s433] %v444
            %v446 = vld [vmem:[%s440 + $0x10] sm:%s433]
            %447 = vst [vmem:[%s441 + $0x10] sm:%s433] %v446
          $region34: #{tpu_custom_call.1} parent=28 // loop_footer
            %s439 = sadd.s32 1, %s435
          $region35: #{tpu_custom_call.1} parent=28 // loop_footer_branch
            %434 = sbr.rel target = $region31
          $region36: #{tpu_custom_call.1} parent=28 // loop_exit
            _
        $region29: #{tpu_custom_call.1} parent=20 // pred_fallthru
          _
      $region21: #{tpu_custom_call.1} parent=16 // pred_fallthru
        _
      %466 = vnop
    $region17: #{tpu_custom_call.1} parent=1 // pred_fallthru
      _
    // Predicated region
    $region52: #{tpu_custom_call.1} parent=1 // pred_check
      _
    $region53: #{tpu_custom_call.1} parent=1 // pred_check_branch
      %468 = sbr.rel (0) target = $region55
    $region54: #{tpu_custom_call.1} parent=1 // pred_region
      _
    $region55: #{tpu_custom_call.1} parent=1 // pred_fallthru
      _

</llo_original>
